<compile_context>
chip_gen: v6e
topology: v6e:2x2x1
jax: 0.10.0
libtpu: 0.0.40
codegen_flags: <defaults>
</compile_context>

<pallas_src>
import functools

import jax
import jax.numpy as jnp
import numpy as np
from jax import lax
from jax.experimental import pallas as pl
from jax.experimental.pallas import tpu as pltpu


def _vmem_capacity_bytes():
    """Per-core VMEM capacity; conservative (v7x) fallback if the query fails."""
    try:
        info = pltpu.get_tpu_info()
        cap = int(getattr(info, "vmem_capacity_bytes", 0))
        if cap > 0:
            return cap
    except Exception:
        pass
    return 64 * 2**20


def _arap_kernel(n_comp, arap_weight, n_true,
                 l_ref, u_ref, ublk_ref, v_ref,
                 energy_ref, grad_ref,
                 e_acc, gv_acc):
    """One (TM, N_pad) row stripe of the Laplacian per grid step.

    e_acc  : (1, 8)        f32 scratch, per-lane partial of sum(U * (L@U))
    gv_acc : (8, 3*nComp)  f32 scratch, raw gradient projection  (L@U)^T @ Vcat
    """
    f32 = jnp.float32
    i = pl.program_id(0)

    @pl.when(i == 0)
    def _init():
        e_acc[...] = jnp.zeros_like(e_acc)
        gv_acc[...] = jnp.zeros_like(gv_acc)

    # (TM, N_pad) @ (N_pad, 8) -> (TM, 8): this stripe of L @ U (MXU, f32 accumulate)
    lu = jnp.dot(l_ref[...], u_ref[...], preferred_element_type=f32)

    # matching row block of U (streamed, avoids in-kernel dynamic slicing)
    u_blk = ublk_ref[...].astype(f32)                                   # (TM, 8)

    # partial energy (lane-wise; reduced across lanes once at finalize)
    e_acc[...] += jnp.sum(u_blk * lu, axis=0, keepdims=True)            # (1, 8)

    # partial gradient projection: GV += (L@U)^T @ Vcat_block  -> (8, 3*nComp)
    dn = (((0,), (0,)), ((), ()))                                       # contract rows
    gv_acc[...] += lax.dot_general(lu, v_ref[...].astype(f32), dn,
                                   preferred_element_type=f32)

    @pl.when(i == pl.num_programs(0) - 1)
    def _finalize():
        scale = arap_weight / n_true
        energy_ref[...] = scale * jnp.sum(e_acc[...], axis=1, keepdims=True)   # (1,1)
        gv = gv_acc[...]
        # cross-lane slices done ONCE here (not per row block)
        grad_ref[...] = (2.0 * scale) * (gv[0:1, 0:n_comp]
                                         + gv[1:2, n_comp:2 * n_comp]
                                         + gv[2:3, 2 * n_comp:3 * n_comp])     # (1, nComp)


class ArapEigenEnergyInputDomain:
    """JAX/Pallas analogue of Src/Energies.py::ArapEigenEnergy_InputDomain."""

    def __init__(self, xyz1, neighborsMatrix, numNeighbors, weightMatrix,
                 eigC, eigV, eigVT, nComp, arapWeight,
                 storage_dtype=jnp.bfloat16, row_block=None):
        f32 = jnp.float32
        xyz1 = jnp.asarray(xyz1, f32)
        N = xyz1.shape[0]
        K = neighborsMatrix.shape[1]

        self.N = N
        self.nComp = int(nComp)
        self.arapWeight = float(arapWeight)
        self.xyz1 = xyz1
        self.xyz2 = jnp.array(xyz1)                    # clone().detach()
        self.eigC = eigC                               # unused by forward (matches module)
        self.eigVT = eigVT                             # eigV.T; kernel reuses eigV instead
        self._storage_dtype = storage_dtype

        # ---- static precompute: masked adjacency -> graph Laplacian L = diag(rS) - S
        nbr = jnp.asarray(neighborsMatrix, jnp.int32)
        wts = jnp.asarray(weightMatrix, f32)
        nnum = jnp.asarray(numNeighbors, jnp.int32).reshape(N)
        mask = (jnp.arange(K, dtype=jnp.int32)[None, :] < nnum[:, None]).astype(f32)
        wm = wts * mask                                                     # (N, K)
        W = jnp.zeros((N, N), f32).at[jnp.arange(N)[:, None], nbr].add(wm)  # (N, N)
        S = W + W.T
        Lap = jnp.diag(jnp.sum(S, axis=1)) - S
        # TODO(synk): for large N replace the dense O(N^2) L with the native K-neighbor
        #             sparse structure + scalar-prefetched gathers.

        # ---- row-tile size from VMEM capacity (double-buffered L stripes ~<= VMEM/3)
        dbytes = int(np.dtype(storage_dtype).itemsize)
        n_lane = ((N + 127) // 128) * 128
        cap = _vmem_capacity_bytes()
        if row_block is None:
            budget = max(cap // 3, 4 * 2**20)
            tm = budget // max(1, 2 * n_lane * dbytes)
            tm = int(tm // 128) * 128
            tm = max(128, min(tm, 2048, n_lane))
        else:
            tm = int(row_block)
            assert tm % 128 == 0, "row_block must be a multiple of 128"
        n_pad = ((N + tm - 1) // tm) * tm              # multiple of tm (and of 128)
        self._tm, self._n_pad = tm, n_pad

        # zero-padded, symmetrized Laplacian in HBM storage dtype (bf16 by default)
        self.L = jnp.zeros((n_pad, n_pad), f32).at[:N, :N].set(Lap).astype(storage_dtype)

        # packed eigen basis  Vcat = [Vx | Vy | Vz]  (n_pad, 3*nComp), row padded
        V = jnp.asarray(eigV, f32)[:, :self.nComp]     # (3N, nComp)
        self._eigV_f32 = V                             # f32 copy for the tiny reconstruction
        V3 = V.reshape(N, 3, self.nComp)
        Vcat = jnp.concatenate([V3[:, 0, :], V3[:, 1, :], V3[:, 2, :]], axis=1)
        self.Vcat = (jnp.zeros((n_pad, 3 * self.nComp), f32)
                     .at[:N, :].set(Vcat).astype(storage_dtype))

        # base = xyz2 - xyz1 is identically zero for this module; keep a static gate
        base = self.xyz2 - self.xyz1
        self._has_base = bool(jnp.any(base != 0))
        self._base = base

        self._pallas_fn = self._make_pallas_fn()

    def _make_pallas_fn(self):
        f32 = jnp.float32
        tm, n_pad = self._tm, self._n_pad
        ncp, ncp3 = self.nComp, 3 * self.nComp
        grid = n_pad // tm
        dbytes = int(np.dtype(self._storage_dtype).itemsize)

        kern = functools.partial(_arap_kernel, ncp, self.arapWeight, float(self.N))

        grid_spec = pltpu.PrefetchScalarGridSpec(
            num_scalar_prefetch=0,
            grid=(grid,),
            in_specs=[
                pl.BlockSpec((tm, n_pad), lambda i: (i, 0)),      # L row stripe (streamed)
                pl.BlockSpec((n_pad, 8), lambda i: (0, 0)),       # U resident
                pl.BlockSpec((tm, 8), lambda i: (i, 0)),          # U row block (streamed)
                pl.BlockSpec((tm, ncp3), lambda i: (i, 0)),       # Vcat row stripe (streamed)
            ],
            out_specs=(
                pl.BlockSpec((1, 1), lambda i: (0, 0)),           # energy (written at finalize)
                pl.BlockSpec((1, ncp), lambda i: (0, 0)),         # grad   (written at finalize)
            ),
            scratch_shapes=[
                pltpu.VMEM((1, 8), f32),                          # energy accumulator
                pltpu.VMEM((8, ncp3), f32),                       # GV accumulator
            ],
        )

        # VMEM estimate from the actual tiles (2x for double buffering), + headroom
        lane = 128
        vmem_needed = (2 * tm * n_pad * dbytes                    # L stripes
                       + 2 * n_pad * lane * dbytes                # resident U (lane padded)
                       + 2 * tm * lane * dbytes                   # U row blocks
                       + 2 * tm * max(ncp3, lane) * dbytes        # Vcat stripes
                       + 8 * max(ncp3, lane) * 4                  # scratch
                       + (2 << 20))                               # headroom
        cap = _vmem_capacity_bytes()
        vmem_limit = int(min(max(vmem_needed, 8 * 2**20), int(cap * 0.9)))

        flops = int(2 * n_pad * n_pad * 8 + 2 * n_pad * 8 * ncp3)
        bytes_accessed = int(dbytes * (n_pad * n_pad + 2 * n_pad * 8 + n_pad * ncp3)
                             + 4 * (1 + ncp))
        cost = pl.CostEstimate(flops=flops, transcendentals=0,
                               bytes_accessed=bytes_accessed)

        # TODO(synk): on v7x, add a leading size-2 "parallel" axis with per-core partial
        #             (energy, GV) outputs summed in the wrapper to use both TensorCores.
        return pl.pallas_call(
            kern,
            out_shape=(jax.ShapeDtypeStruct((1, 1), f32),
                       jax.ShapeDtypeStruct((1, ncp), f32)),
            grid_spec=grid_spec,
            compiler_params=pltpu.CompilerParams(
                dimension_semantics=("arbitrary",),               # reduction over row stripes
                vmem_limit_bytes=vmem_limit),
            cost_estimate=cost,
        )

    def forward(self, newSample):
        """Returns (arapEnergy, d arapEnergy / d newSample), as in the torch module."""
        f32 = jnp.float32
        ncp = self.nComp
        ns = jnp.asarray(newSample, f32)
        c = ns.reshape(-1)[:ncp]

        # tiny eigen reconstruction hoisted out of the kernel (plain JAX matvec)
        d = (self._eigV_f32 @ c).reshape(self.N, 3)
        if self._has_base:                       # xyz2 - xyz1 (zero for this module)
            d = d + self._base
        U = jnp.zeros((self._n_pad, 8), f32).at[:self.N, :3].set(d)
        U = U.astype(self._storage_dtype)

        energy, grad = self._pallas_fn(self.L, U, U, self.Vcat)

        grad_flat = grad.reshape(-1)
        grad_out = grad_flat.reshape(ns.shape) if ns.size == ncp else grad_flat
        return energy[0, 0], grad_out

    __call__ = forward


# ----------------------------------------------------------------------------- tests
def _make_problem(key, N, K, nComp):
    k1, k2, k3, k4, k5 = jax.random.split(key, 5)
    xyz1 = jax.random.normal(k1, (N, 3), jnp.float32)
    neighbors = ((jnp.arange(N)[:, None] + jnp.arange(1, K + 1)[None, :]) % N).astype(jnp.int32)
    numNeighbors = (4 + (jnp.arange(N) % (K - 3))).astype(jnp.int32)      # in [4, K]
    weights = jnp.abs(jax.random.normal(k2, (N, K), jnp.float32)) + 0.1
    eigV = jax.random.normal(k3, (3 * N, nComp), jnp.float32) * 0.1
    eigC = jax.random.normal(k4, (nComp,), jnp.float32)
    newSample = jax.random.normal(k5, (nComp,), jnp.float32)
    return xyz1, neighbors, numNeighbors, weights, eigV, eigC, newSample


def _reference(xyz1, neighbors, numNeighbors, weights, eigV, nComp, arapWeight, c):
    N, K = weights.shape

    def mean_energy(cc):
        d = (eigV[:, :nComp] @ cc).reshape(N, 3)
        p_new = xyz1 + d                          # xyz2 == xyz1
        r = (p_new[:, None, :] - p_new[neighbors]) - (xyz1[:, None, :] - xyz1[neighbors])
        mask = (jnp.arange(K)[None, :] < numNeighbors[:, None]).astype(jnp.float32)
        Ei = arapWeight * jnp.sum(mask * weights * jnp.sum(r * r, axis=-1), axis=1)
        return Ei.mean()

    return jax.value_and_grad(mean_energy)(c)


if __name__ == "__main__":
    key = jax.random.PRNGKey(0)
    arapWeight = 0.5

    # (N, K, nComp, storage_dtype, row_block, rtol, atol)
    configs = [
        (64, 8, 16, jnp.float32, None, 1e-3, 1e-4),    # single-block, f32 exact-ish path
        (64, 8, 16, jnp.bfloat16, None, 2e-2, 2e-3),    # single-block, bf16 storage
        (296, 8, 16, jnp.float32, 128, 1e-3, 1e-4),    # multi-block grid + padding, f32
        (296, 8, 16, jnp.bfloat16, 128, 2e-2, 2e-3),    # multi-block grid + padding, bf16
    ]

    for idx, (N, K, nComp, dt, rb, rtol, atol) in enumerate(configs):
        kk = jax.random.fold_in(key, idx)
        xyz1, nbrs, nnum, wts, eigV, eigC, newSample = _make_problem(kk, N, K, nComp)

        module = ArapEigenEnergyInputDomain(xyz1, nbrs, nnum, wts, eigC, eigV, eigV.T,
                                            nComp, arapWeight,
                                            storage_dtype=dt, row_block=rb)
        energy, grad = module.forward(newSample)
        energy, grad = jax.block_until_ready((energy, grad))

        ref_e, ref_g = _reference(xyz1, nbrs, nnum, wts, eigV, nComp, arapWeight, newSample)
        assert np.allclose(np.asarray(energy), np.asarray(ref_e), rtol=rtol, atol=atol), \
            (idx, float(energy), float(ref_e))
        assert np.allclose(np.asarray(grad), np.asarray(ref_g), rtol=rtol, atol=atol), idx

    print("KERNEL_OK")
</pallas_src>

<mosaic_0001>
module attributes {stable_mosaic.version = 11 : i64} {
  func.func @_arap_kernel(%arg0: i32, %arg1: memref<128x128xf32, #tpu.memory_space<vmem>>, %arg2: memref<128x8xf32, #tpu.memory_space<vmem>>, %arg3: memref<128x8xf32, #tpu.memory_space<vmem>>, %arg4: memref<128x48xf32, #tpu.memory_space<vmem>>, %arg5: memref<1x1xf32, #tpu.memory_space<vmem>>, %arg6: memref<1x16xf32, #tpu.memory_space<vmem>>, %arg7: memref<1x8xf32, #tpu.memory_space<vmem>>, %arg8: memref<8x48xf32, #tpu.memory_space<vmem>>) attributes {dimension_semantics = [#tpu.dimension_semantics<arbitrary>], iteration_bounds = array<i64: 1>, scalar_prefetch = 0 : i64, scratch_operands = 2 : i64, tpu.core_type = #tpu.core_type<tc>, window_params = [{transform_indices = @transform_0, window_bounds = array<i64: 128, 128>}, {pipeline_mode = #tpu.pipeline_mode<synchronous>, transform_indices = @transform_1, window_bounds = array<i64: 128, 8>}, {transform_indices = @transform_2, window_bounds = array<i64: 128, 8>}, {transform_indices = @transform_3, window_bounds = array<i64: 128, 48>}, {pipeline_mode = #tpu.pipeline_mode<synchronous>, transform_indices = @transform_4, window_bounds = array<i64: 1, 1>}, {pipeline_mode = #tpu.pipeline_mode<synchronous>, transform_indices = @transform_5, window_bounds = array<i64: 1, 16>}]} {
    %c0_i32 = arith.constant 0 : i32
    %0 = arith.cmpi eq, %arg0, %c0_i32 : i32
    %1 = arith.extui %0 : i1 to i32
    %c0_i32_0 = arith.constant 0 : i32
    %2 = arith.cmpi ne, %1, %c0_i32_0 : i32
    scf.if %2 {
      %cst_20 = arith.constant 0.000000e+00 : f32
      %21 = vector.broadcast %cst_20 : f32 to vector<1x8xf32>
      %c0_21 = arith.constant 0 : index
      %c0_22 = arith.constant 0 : index
      %22 = vector.load %arg7[%c0_21, %c0_22] : memref<1x8xf32, #tpu.memory_space<vmem>>, vector<1x8xf32>
      tpu.vector_store %arg7[%c0_21, %c0_22], %21 {strides = array<i32>} : memref<1x8xf32, #tpu.memory_space<vmem>>, vector<1x8xf32>,
      %cst_23 = arith.constant 0.000000e+00 : f32
      %23 = vector.broadcast %cst_23 : f32 to vector<8x48xf32>
      %c0_24 = arith.constant 0 : index
      %c0_25 = arith.constant 0 : index
      %24 = vector.load %arg8[%c0_24, %c0_25] : memref<8x48xf32, #tpu.memory_space<vmem>>, vector<8x48xf32>
      tpu.vector_store %arg8[%c0_24, %c0_25], %23 {strides = array<i32>} : memref<8x48xf32, #tpu.memory_space<vmem>>, vector<8x48xf32>,
    } else {
    }
    %c0 = arith.constant 0 : index
    %c0_1 = arith.constant 0 : index
    %3 = vector.load %arg1[%c0, %c0_1] : memref<128x128xf32, #tpu.memory_space<vmem>>, vector<128x128xf32>
    %c0_2 = arith.constant 0 : index
    %c0_3 = arith.constant 0 : index
    %4 = vector.load %arg2[%c0_2, %c0_3] : memref<128x8xf32, #tpu.memory_space<vmem>>, vector<128x8xf32>
    %cst = arith.constant dense<0.000000e+00> : vector<128x8xf32>
    %5 = tpu.matmul %3, %4, %cst {dimension_numbers = #tpu.dot_dimension_numbers<[1], [0], [0], [1], [0, 0, 1, 1], [], []>} : vector<128x128xf32>, vector<128x8xf32>, vector<128x8xf32> -> vector<128x8xf32>
    %c0_4 = arith.constant 0 : index
    %c0_5 = arith.constant 0 : index
    %6 = vector.load %arg3[%c0_4, %c0_5] : memref<128x8xf32, #tpu.memory_space<vmem>>, vector<128x8xf32>
    %c0_6 = arith.constant 0 : index
    %c0_7 = arith.constant 0 : index
    %7 = vector.load %arg7[%c0_6, %c0_7] : memref<1x8xf32, #tpu.memory_space<vmem>>, vector<1x8xf32>
    %8 = arith.mulf %6, %5 : vector<128x8xf32>
    %cst_8 = arith.constant dense<0.000000e+00> : vector<8xf32>
    %9 = vector.multi_reduction <add>, %8, %cst_8 [0] : vector<128x8xf32> to vector<8xf32>
    %10 = vector.shape_cast %9 : vector<8xf32> to vector<1x8xf32>
    %11 = arith.addf %7, %10 : vector<1x8xf32>
    %c0_9 = arith.constant 0 : index
    %c0_10 = arith.constant 0 : index
    %12 = vector.load %arg7[%c0_9, %c0_10] : memref<1x8xf32, #tpu.memory_space<vmem>>, vector<1x8xf32>
    tpu.vector_store %arg7[%c0_9, %c0_10], %11 {strides = array<i32>} : memref<1x8xf32, #tpu.memory_space<vmem>>, vector<1x8xf32>,
    %c0_11 = arith.constant 0 : index
    %c0_12 = arith.constant 0 : index
    %13 = vector.load %arg8[%c0_11, %c0_12] : memref<8x48xf32, #tpu.memory_space<vmem>>, vector<8x48xf32>
    %c0_13 = arith.constant 0 : index
    %c0_14 = arith.constant 0 : index
    %14 = vector.load %arg4[%c0_13, %c0_14] : memref<128x48xf32, #tpu.memory_space<vmem>>, vector<128x48xf32>
    %cst_15 = arith.constant dense<0.000000e+00> : vector<8x48xf32>
    %15 = tpu.matmul %5, %14, %cst_15 {dimension_numbers = #tpu.dot_dimension_numbers<[0], [0], [1], [1], [0, 1, 1, 1], [], []>} : vector<128x8xf32>, vector<128x48xf32>, vector<8x48xf32> -> vector<8x48xf32>
    %16 = arith.addf %13, %15 : vector<8x48xf32>
    %c0_16 = arith.constant 0 : index
    %c0_17 = arith.constant 0 : index
    %17 = vector.load %arg8[%c0_16, %c0_17] : memref<8x48xf32, #tpu.memory_space<vmem>>, vector<8x48xf32>
    tpu.vector_store %arg8[%c0_16, %c0_17], %16 {strides = array<i32>} : memref<8x48xf32, #tpu.memory_space<vmem>>, vector<8x48xf32>,
    %c0_i32_18 = arith.constant 0 : i32
    %18 = arith.cmpi eq, %arg0, %c0_i32_18 : i32
    %19 = arith.extui %18 : i1 to i32
    %c0_i32_19 = arith.constant 0 : i32
    %20 = arith.cmpi ne, %19, %c0_i32_19 : i32
    scf.if %20 {
      %c0_20 = arith.constant 0 : index
      %c0_21 = arith.constant 0 : index
      %21 = vector.load %arg7[%c0_20, %c0_21] : memref<1x8xf32, #tpu.memory_space<vmem>>, vector<1x8xf32>
      %cst_22 = arith.constant dense<0.000000e+00> : vector<1xf32>
      %22 = vector.multi_reduction <add>, %21, %cst_22 [1] : vector<1x8xf32> to vector<1xf32>
      %23 = vector.shape_cast %22 : vector<1xf32> to vector<1x1xf32>
      %cst_23 = arith.constant 7.812500e-03 : f32
      %24 = vector.broadcast %cst_23 : f32 to vector<1x1xf32>
      %25 = arith.mulf %24, %23 : vector<1x1xf32>
      %c0_24 = arith.constant 0 : index
      %c0_25 = arith.constant 0 : index
      %26 = vector.load %arg5[%c0_24, %c0_25] : memref<1x1xf32, #tpu.memory_space<vmem>>, vector<1x1xf32>
      tpu.vector_store %arg5[%c0_24, %c0_25], %25 {strides = array<i32>} : memref<1x1xf32, #tpu.memory_space<vmem>>, vector<1x1xf32>,
      %c0_26 = arith.constant 0 : index
      %c0_27 = arith.constant 0 : index
      %27 = vector.load %arg8[%c0_26, %c0_27] : memref<8x48xf32, #tpu.memory_space<vmem>>, vector<8x48xf32>
      %28 = vector.extract_strided_slice %27 {offsets = [0, 0], sizes = [1, 16], strides = [1, 1]} : vector<8x48xf32> to vector<1x16xf32>
      %29 = vector.extract_strided_slice %27 {offsets = [1, 16], sizes = [1, 16], strides = [1, 1]} : vector<8x48xf32> to vector<1x16xf32>
      %30 = arith.addf %28, %29 : vector<1x16xf32>
      %31 = vector.extract_strided_slice %27 {offsets = [2, 32], sizes = [1, 16], strides = [1, 1]} : vector<8x48xf32> to vector<1x16xf32>
      %32 = arith.addf %30, %31 : vector<1x16xf32>
      %cst_28 = arith.constant 1.562500e-02 : f32
      %33 = vector.broadcast %cst_28 : f32 to vector<1x16xf32>
      %34 = arith.mulf %33, %32 : vector<1x16xf32>
      %c0_29 = arith.constant 0 : index
      %c0_30 = arith.constant 0 : index
      %35 = vector.load %arg6[%c0_29, %c0_30] : memref<1x16xf32, #tpu.memory_space<vmem>>, vector<1x16xf32>
      tpu.vector_store %arg6[%c0_29, %c0_30], %34 {strides = array<i32>} : memref<1x16xf32, #tpu.memory_space<vmem>>, vector<1x16xf32>,
    } else {
    }
    return
  }
  func.func @transform_0(%arg0: i32) -> (i32, i32) {
    %c0_i32 = arith.constant 0 : i32
    %c0_i32_0 = arith.constant 0 : i32
    return %arg0, %c0_i32 : i32, i32
  }
  func.func @transform_1(%arg0: i32) -> (i32, i32) {
    %c0_i32 = arith.constant 0 : i32
    %c0_i32_0 = arith.constant 0 : i32
    %c0_i32_1 = arith.constant 0 : i32
    return %c0_i32, %c0_i32_0 : i32, i32
  }
  func.func @transform_2(%arg0: i32) -> (i32, i32) {
    %c0_i32 = arith.constant 0 : i32
    %c0_i32_0 = arith.constant 0 : i32
    return %arg0, %c0_i32 : i32, i32
  }
  func.func @transform_3(%arg0: i32) -> (i32, i32) {
    %c0_i32 = arith.constant 0 : i32
    %c0_i32_0 = arith.constant 0 : i32
    return %arg0, %c0_i32 : i32, i32
  }
  func.func @transform_4(%arg0: i32) -> (i32, i32) {
    %c0_i32 = arith.constant 0 : i32
    %c0_i32_0 = arith.constant 0 : i32
    %c0_i32_1 = arith.constant 0 : i32
    return %c0_i32, %c0_i32_0 : i32, i32
  }
  func.func @transform_5(%arg0: i32) -> (i32, i32) {
    %c0_i32 = arith.constant 0 : i32
    %c0_i32_0 = arith.constant 0 : i32
    %c0_i32_1 = arith.constant 0 : i32
    return %c0_i32, %c0_i32_0 : i32, i32
  }
}

</mosaic_0001>

<llo_original>
// kernel: tpu_custom_call.1
$region0: #{tpu_custom_call.1}
  #allocation0 [shape = 'u32[]', space=smem, size = 0x4, offset = 0x4, fixed_abs, tag = 'smem constant byte address 0x4 - core index']
  #allocation1 [shape = 'u32[144,128]{1,0:T(1,128)}', space=vmem, size = 0x12000, scoped, tag = 'internal scratch']
  #allocation2 [shape = 'f32[1,8]{1,0:T(1,128)}', space=vmem, size = 0x200, scoped, tag = 'scratch operand']
  #allocation3 [shape = 'f32[8,48]{1,0:T(8,128)}', space=vmem, size = 0x1000, scoped, tag = 'scratch operand']
  %s0 = inlined_call_operand.vmem [shape: f32[128,128], index: 0, kind: input, shape index: {}]
  %s1 = inlined_call_operand.vmem [shape: f32[128,8], index: 1, kind: input, shape index: {}]
  %s2 = inlined_call_operand.vmem [shape: f32[128,8], index: 2, kind: input, shape index: {}]
  %s3 = inlined_call_operand.vmem [shape: f32[128,48], index: 3, kind: input, shape index: {}]
  %s4 = inlined_call_operand.hbm [shape: f32[1,1], index: 4, kind: output, shape index: {0}]
  %s5 = inlined_call_operand.hbm [shape: f32[1,16], index: 5, kind: output, shape index: {1}]
  %6 = xla_tuple %s4, %s5
  %s7 = sld [smem:[#allocation0]]
  $region42: #{tpu_custom_call.1} parent=0
    _
  %s9 = ssub.s32 1, %s7
  %s10 = scalar_select 0, %s9, %s7
  $region1: #{tpu_custom_call.1} parent=0
    #allocation4 [shape = 'u8[512]{0}', space=vmem, size = 0x400, scoped, tag = 'output window, operand 0, single buffered']
    #allocation5 [shape = 's32[1]{0}', space=sflag, size = 0x4, scoped, tag = 'scoped memory for tpu_custom_call.1']
    #allocation6 [shape = 'u8[512]{0}', space=vmem, size = 0x400, scoped, tag = 'output window, operand 1, single buffered']
    #allocation7 [shape = 's32[1]{0}', space=sflag, size = 0x4, scoped, tag = 'scoped memory for tpu_custom_call.1']
    %11 = vsyncpa [#allocation5], 0
    %12 = vsyncpa [#allocation7], 0
    // Predicated region
    $region2: #{tpu_custom_call.1} parent=1 // pred_check
      _
    $region3: #{tpu_custom_call.1} parent=1 // pred_check_branch
      %14 = sbr.rel (0) target = $region5
    $region4: #{tpu_custom_call.1} parent=1 // pred_region
      _
    $region5: #{tpu_custom_call.1} parent=1 // pred_fallthru
      _
    // Predicated region
    $region6: #{tpu_custom_call.1} parent=1 // pred_check
      _
    $region7: #{tpu_custom_call.1} parent=1 // pred_check_branch
      %16 = sbr.rel (0) target = $region9
    $region8: #{tpu_custom_call.1} parent=1 // pred_region
      _
    $region9: #{tpu_custom_call.1} parent=1 // pred_fallthru
      _
    // Predicated region
    $region10: #{tpu_custom_call.1} parent=1 // pred_check
      _
    $region11: #{tpu_custom_call.1} parent=1 // pred_check_branch
      %18 = sbr.rel (0) target = $region13
    $region12: #{tpu_custom_call.1} parent=1 // pred_region
      _
    $region13: #{tpu_custom_call.1} parent=1 // pred_fallthru
      _
    // Predicated region
    $region14: #{tpu_custom_call.1} parent=1 // pred_check
      _
    $region15: #{tpu_custom_call.1} parent=1 // pred_check_branch
      %20 = sbr.rel (0) target = $region17
    $region16: #{tpu_custom_call.1} parent=1 // pred_region
      _
    $region17: #{tpu_custom_call.1} parent=1 // pred_fallthru
      _
    %p21 = scmp.eq.s32.totalorder 0, 0
    // Predicated region
    $region18: #{tpu_custom_call.1} parent=1 // pred_check
      %p22 = pneg %p21
    $region19: #{tpu_custom_call.1} parent=1 // pred_check_branch
      %24 = sbr.rel (%p22) target = $region21
    $region20: #{tpu_custom_call.1} parent=1 // pred_region
      %vm25 = vcmask 57344
      %26 = vst.msk [vmem:[#allocation2] sm:$0x1] %vm25, 0.0
      %vm27 = vcmask 392192
      %28 = vst.msk [vmem:[#allocation3] sm:$0xff] %vm27, 0.0
    $region21: #{tpu_custom_call.1} parent=1 // pred_fallthru
      _
    %v29 = vld [vmem:[%s0] sm:$0xff]
    %v30 = vld [vmem:[%s0 + $0x8] sm:$0xff]
    %v31 = vld [vmem:[%s0 + $0x10] sm:$0xff]
    %v32 = vld [vmem:[%s0 + $0x18] sm:$0xff]
    %v33 = vld [vmem:[%s0 + $0x20] sm:$0xff]
    %v34 = vld [vmem:[%s0 + $0x28] sm:$0xff]
    %v35 = vld [vmem:[%s0 + $0x30] sm:$0xff]
    %v36 = vld [vmem:[%s0 + $0x38] sm:$0xff]
    %v37 = vld [vmem:[%s0 + $0x40] sm:$0xff]
    %v38 = vld [vmem:[%s0 + $0x48] sm:$0xff]
    %v39 = vld [vmem:[%s0 + $0x50] sm:$0xff]
    %v40 = vld [vmem:[%s0 + $0x58] sm:$0xff]
    %v41 = vld [vmem:[%s0 + $0x60] sm:$0xff]
    %v42 = vld [vmem:[%s0 + $0x68] sm:$0xff]
    %v43 = vld [vmem:[%s0 + $0x70] sm:$0xff]
    %v44 = vld [vmem:[%s0 + $0x78] sm:$0xff]
    %v45 = vld [vmem:[%s1] sm:$0xff]
    %v46 = vld [vmem:[%s1 + $0x8] sm:$0xff]
    %v47 = vld [vmem:[%s1 + $0x10] sm:$0xff]
    %v48 = vld [vmem:[%s1 + $0x18] sm:$0xff]
    %v49 = vld [vmem:[%s1 + $0x20] sm:$0xff]
    %v50 = vld [vmem:[%s1 + $0x28] sm:$0xff]
    %v51 = vld [vmem:[%s1 + $0x30] sm:$0xff]
    %v52 = vld [vmem:[%s1 + $0x38] sm:$0xff]
    %v53 = vld [vmem:[%s1 + $0x40] sm:$0xff]
    %v54 = vld [vmem:[%s1 + $0x48] sm:$0xff]
    %v55 = vld [vmem:[%s1 + $0x50] sm:$0xff]
    %v56 = vld [vmem:[%s1 + $0x58] sm:$0xff]
    %v57 = vld [vmem:[%s1 + $0x60] sm:$0xff]
    %v58 = vld [vmem:[%s1 + $0x68] sm:$0xff]
    %v59 = vld [vmem:[%s1 + $0x70] sm:$0xff]
    %v60 = vld [vmem:[%s1 + $0x78] sm:$0xff]
    %61 = vmatprep.subr.mxu0 0.0
    %62 = vmatpush1.msra.mxu0 %v60
    %63 = vmatprep.subr.mxu0 0.0
    %64 = vmatpush1.msra.mxu0 %v59
    %65 = vmatprep.subr.mxu0 0.0
    %66 = vmatpush1.msra.mxu0 %v58
    %67 = vmatprep.subr.mxu0 0.0
    %68 = vmatpush1.msra.mxu0 %v57
    %69 = vmatprep.subr.mxu0 0.0
    %70 = vmatpush1.msra.mxu0 %v56
    %71 = vmatprep.subr.mxu0 0.0
    %72 = vmatpush1.msra.mxu0 %v55
    %73 = vmatprep.subr.mxu0 0.0
    %74 = vmatpush1.msra.mxu0 %v54
    %75 = vmatprep.subr.mxu0 0.0
    %76 = vmatpush1.msra.mxu0 %v53
    %77 = vmatprep.subr.mxu0 0.0
    %78 = vmatpush1.msra.mxu0 %v52
    %79 = vmatprep.subr.mxu0 0.0
    %80 = vmatpush1.msra.mxu0 %v51
    %81 = vmatprep.subr.mxu0 0.0
    %82 = vmatpush1.msra.mxu0 %v50
    %83 = vmatprep.subr.mxu0 0.0
    %84 = vmatpush1.msra.mxu0 %v49
    %85 = vmatprep.subr.mxu0 0.0
    %86 = vmatpush1.msra.mxu0 %v48
    %87 = vmatprep.subr.mxu0 0.0
    %88 = vmatpush1.msra.mxu0 %v47
    %89 = vmatprep.subr.mxu0 0.0
    %90 = vmatpush1.msra.mxu0 %v46
    %91 = vmatprep.subr.mxu0 0.0
    %92 = vmatpush1.msra.mxu0 %v45
    %93 = vmatprep.subr.mxu0 0.0
    %94 = vmatpush2.msra.mxu0 0.0
    %95 = vmatprep.subr.mxu0 0.0
    %96 = vmatpush2.msra.mxu0 0.0
    %97 = vmatprep.subr.mxu0 0.0
    %98 = vmatpush2.msra.mxu0 0.0
    %99 = vmatprep.subr.mxu0 0.0
    %100 = vmatpush2.msra.mxu0 0.0
    %101 = vmatprep.subr.mxu0 0.0
    %102 = vmatpush2.msra.mxu0 0.0
    %103 = vmatprep.subr.mxu0 0.0
    %104 = vmatpush2.msra.mxu0 0.0
    %105 = vmatprep.subr.mxu0 0.0
    %106 = vmatpush2.msra.mxu0 0.0
    %107 = vmatprep.subr.mxu0 0.0
    %108 = vmatpush2.msra.mxu0 0.0
    %109 = vmatprep.subr.mxu0 0.0
    %110 = vmatpush2.msra.mxu0 0.0
    %111 = vmatprep.subr.mxu0 0.0
    %112 = vmatpush2.msra.mxu0 0.0
    %113 = vmatprep.subr.mxu0 0.0
    %114 = vmatpush2.msra.mxu0 0.0
    %115 = vmatprep.subr.mxu0 0.0
    %116 = vmatpush2.msra.mxu0 0.0
    %117 = vmatprep.subr.mxu0 0.0
    %118 = vmatpush2.msra.mxu0 0.0
    %119 = vmatprep.subr.mxu0 0.0
    %120 = vmatpush2.msra.mxu0 0.0
    %121 = vmatprep.subr.mxu0 0.0
    %122 = vmatpush2.msra.mxu0 0.0
    %123 = vmatprep.subr.mxu0 0.0
    %124 = vmatpush2.msra.mxu0 0.0
    %125 = vmatprep.mubr.f32.mxu0 0.0
    %126 = vmatmul.mubr.f32.gmra.mxu0 %v29
    %v127 = vpop.f32.mrf.mxu0
    %v128 = vadd.f32 0.0, %v127
    %v129 = vpop.f32.mrf.mxu0
    %130 = vmatprep.mubr.f32.mxu0 0.0
    %131 = vmatmul.mubr.f32.gmra.mxu0 %v30
    %v132 = vpop.f32.mrf.mxu0
    %v133 = vadd.f32 0.0, %v132
    %v134 = vpop.f32.mrf.mxu0
    %135 = vmatprep.mubr.f32.mxu0 0.0
    %136 = vmatmul.mubr.f32.gmra.mxu0 %v31
    %v137 = vpop.f32.mrf.mxu0
    %v138 = vadd.f32 0.0, %v137
    %v139 = vpop.f32.mrf.mxu0
    %140 = vmatprep.mubr.f32.mxu0 0.0
    %141 = vmatmul.mubr.f32.gmra.mxu0 %v32
    %v142 = vpop.f32.mrf.mxu0
    %v143 = vadd.f32 0.0, %v142
    %v144 = vpop.f32.mrf.mxu0
    %145 = vmatprep.mubr.f32.mxu0 0.0
    %146 = vmatmul.mubr.f32.gmra.mxu0 %v33
    %v147 = vpop.f32.mrf.mxu0
    %v148 = vadd.f32 0.0, %v147
    %v149 = vpop.f32.mrf.mxu0
    %150 = vmatprep.mubr.f32.mxu0 0.0
    %151 = vmatmul.mubr.f32.gmra.mxu0 %v34
    %v152 = vpop.f32.mrf.mxu0
    %v153 = vadd.f32 0.0, %v152
    %v154 = vpop.f32.mrf.mxu0
    %155 = vmatprep.mubr.f32.mxu0 0.0
    %156 = vmatmul.mubr.f32.gmra.mxu0 %v35
    %v157 = vpop.f32.mrf.mxu0
    %v158 = vadd.f32 0.0, %v157
    %v159 = vpop.f32.mrf.mxu0
    %160 = vmatprep.mubr.f32.mxu0 0.0
    %161 = vmatmul.mubr.f32.gmra.mxu0 %v36
    %v162 = vpop.f32.mrf.mxu0
    %v163 = vadd.f32 0.0, %v162
    %v164 = vpop.f32.mrf.mxu0
    %165 = vmatprep.mubr.f32.mxu0 0.0
    %166 = vmatmul.mubr.f32.gmra.mxu0 %v37
    %v167 = vpop.f32.mrf.mxu0
    %v168 = vadd.f32 0.0, %v167
    %v169 = vpop.f32.mrf.mxu0
    %170 = vmatprep.mubr.f32.mxu0 0.0
    %171 = vmatmul.mubr.f32.gmra.mxu0 %v38
    %v172 = vpop.f32.mrf.mxu0
    %v173 = vadd.f32 0.0, %v172
    %v174 = vpop.f32.mrf.mxu0
    %175 = vmatprep.mubr.f32.mxu0 0.0
    %176 = vmatmul.mubr.f32.gmra.mxu0 %v39
    %v177 = vpop.f32.mrf.mxu0
    %v178 = vadd.f32 0.0, %v177
    %v179 = vpop.f32.mrf.mxu0
    %180 = vmatprep.mubr.f32.mxu0 0.0
    %181 = vmatmul.mubr.f32.gmra.mxu0 %v40
    %v182 = vpop.f32.mrf.mxu0
    %v183 = vadd.f32 0.0, %v182
    %v184 = vpop.f32.mrf.mxu0
    %185 = vmatprep.mubr.f32.mxu0 0.0
    %186 = vmatmul.mubr.f32.gmra.mxu0 %v41
    %v187 = vpop.f32.mrf.mxu0
    %v188 = vadd.f32 0.0, %v187
    %v189 = vpop.f32.mrf.mxu0
    %190 = vmatprep.mubr.f32.mxu0 0.0
    %191 = vmatmul.mubr.f32.gmra.mxu0 %v42
    %v192 = vpop.f32.mrf.mxu0
    %v193 = vadd.f32 0.0, %v192
    %v194 = vpop.f32.mrf.mxu0
    %195 = vmatprep.mubr.f32.mxu0 0.0
    %196 = vmatmul.mubr.f32.gmra.mxu0 %v43
    %v197 = vpop.f32.mrf.mxu0
    %v198 = vadd.f32 0.0, %v197
    %v199 = vpop.f32.mrf.mxu0
    %200 = vmatprep.mubr.f32.mxu0 0.0
    %201 = vmatmul.mubr.f32.gmra.mxu0 %v44
    %v202 = vpop.f32.mrf.mxu0
    %v203 = vadd.f32 0.0, %v202
    %v204 = vpop.f32.mrf.mxu0
    %205 = vdwg.mxu0
    %v206 = vld [vmem:[%s2] sm:$0xff]
    %v207 = vld [vmem:[%s2 + $0x8] sm:$0xff]
    %v208 = vld [vmem:[%s2 + $0x10] sm:$0xff]
    %v209 = vld [vmem:[%s2 + $0x18] sm:$0xff]
    %v210 = vld [vmem:[%s2 + $0x20] sm:$0xff]
    %v211 = vld [vmem:[%s2 + $0x28] sm:$0xff]
    %v212 = vld [vmem:[%s2 + $0x30] sm:$0xff]
    %v213 = vld [vmem:[%s2 + $0x38] sm:$0xff]
    %v214 = vld [vmem:[%s2 + $0x40] sm:$0xff]
    %v215 = vld [vmem:[%s2 + $0x48] sm:$0xff]
    %v216 = vld [vmem:[%s2 + $0x50] sm:$0xff]
    %v217 = vld [vmem:[%s2 + $0x58] sm:$0xff]
    %v218 = vld [vmem:[%s2 + $0x60] sm:$0xff]
    %v219 = vld [vmem:[%s2 + $0x68] sm:$0xff]
    %v220 = vld [vmem:[%s2 + $0x70] sm:$0xff]
    %v221 = vld [vmem:[%s2 + $0x78] sm:$0xff]
    %v222 = vld [vmem:[#allocation2] sm:$0x1]
    %v223 = vmul.f32 %v206, %v128
    %v224 = vmul.f32 %v207, %v133
    %v225 = vmul.f32 %v208, %v138
    %v226 = vmul.f32 %v209, %v143
    %v227 = vmul.f32 %v210, %v148
    %v228 = vmul.f32 %v211, %v153
    %v229 = vmul.f32 %v212, %v158
    %v230 = vmul.f32 %v213, %v163
    %v231 = vmul.f32 %v214, %v168
    %v232 = vmul.f32 %v215, %v173
    %v233 = vmul.f32 %v216, %v178
    %v234 = vmul.f32 %v217, %v183
    %v235 = vmul.f32 %v218, %v188
    %v236 = vmul.f32 %v219, %v193
    %v237 = vmul.f32 %v220, %v198
    %v238 = vmul.f32 %v221, %v203
    %vm239 = vcmask 64512
    %v240 = vsel %vm239, %v223, 0.0
    %v241 = vsel %vm239, %v224, 0.0
    %v242 = vadd.f32 %v240, %v241
    %v243 = vsel %vm239, %v225, 0.0
    %v244 = vadd.f32 %v242, %v243
    %v245 = vsel %vm239, %v226, 0.0
    %v246 = vadd.f32 %v244, %v245
    %v247 = vsel %vm239, %v227, 0.0
    %v248 = vadd.f32 %v246, %v247
    %v249 = vsel %vm239, %v228, 0.0
    %v250 = vadd.f32 %v248, %v249
    %v251 = vsel %vm239, %v229, 0.0
    %v252 = vadd.f32 %v250, %v251
    %v253 = vsel %vm239, %v230, 0.0
    %v254 = vadd.f32 %v252, %v253
    %v255 = vsel %vm239, %v231, 0.0
    %v256 = vadd.f32 %v254, %v255
    %v257 = vsel %vm239, %v232, 0.0
    %v258 = vadd.f32 %v256, %v257
    %v259 = vsel %vm239, %v233, 0.0
    %v260 = vadd.f32 %v258, %v259
    %v261 = vsel %vm239, %v234, 0.0
    %v262 = vadd.f32 %v260, %v261
    %v263 = vsel %vm239, %v235, 0.0
    %v264 = vadd.f32 %v262, %v263
    %v265 = vsel %vm239, %v236, 0.0
    %v266 = vadd.f32 %v264, %v265
    %v267 = vsel %vm239, %v237, 0.0
    %v268 = vadd.f32 %v266, %v267
    %v269 = vsel %vm239, %v238, 0.0
    %v270 = vadd.f32 %v268, %v269
    %v271 = vrot.slane %v270, 4
    %v272 = vadd.f32 %v270, %v271
    %v273 = vrot.slane %v272, 2
    %v274 = vadd.f32 %v272, %v273
    %v275 = vrot.slane %v274, 1
    %v276 = vadd.f32 %v274, %v275
    %v277 = vadd.f32 %v222, %v276
    %vm278 = vcmask 57344
    %279 = vst.msk [vmem:[#allocation2] sm:$0x1] %vm278, %v277
    %v280 = vld [vmem:[#allocation3] sm:$0xff]
    %v281 = vld [vmem:[%s3] sm:$0xff]
    %v282 = vld [vmem:[%s3 + $0x8] sm:$0xff]
    %v283 = vld [vmem:[%s3 + $0x10] sm:$0xff]
    %v284 = vld [vmem:[%s3 + $0x18] sm:$0xff]
    %v285 = vld [vmem:[%s3 + $0x20] sm:$0xff]
    %v286 = vld [vmem:[%s3 + $0x28] sm:$0xff]
    %v287 = vld [vmem:[%s3 + $0x30] sm:$0xff]
    %v288 = vld [vmem:[%s3 + $0x38] sm:$0xff]
    %v289 = vld [vmem:[%s3 + $0x40] sm:$0xff]
    %v290 = vld [vmem:[%s3 + $0x48] sm:$0xff]
    %v291 = vld [vmem:[%s3 + $0x50] sm:$0xff]
    %v292 = vld [vmem:[%s3 + $0x58] sm:$0xff]
    %v293 = vld [vmem:[%s3 + $0x60] sm:$0xff]
    %v294 = vld [vmem:[%s3 + $0x68] sm:$0xff]
    %v295 = vld [vmem:[%s3 + $0x70] sm:$0xff]
    %v296 = vld [vmem:[%s3 + $0x78] sm:$0xff]
    %297 = vxpose.xlu0.b32.start [1/16] %v128, 128
    %298 = vxpose.xlu0.b32.cont [2/16] %v133, 128
    %299 = vxpose.xlu0.b32.cont [3/16] %v138, 128
    %300 = vxpose.xlu0.b32.cont [4/16] %v143, 128
    %301 = vxpose.xlu0.b32.cont [5/16] %v148, 128
    %302 = vxpose.xlu0.b32.cont [6/16] %v153, 128
    %303 = vxpose.xlu0.b32.cont [7/16] %v158, 128
    %304 = vxpose.xlu0.b32.cont [8/16] %v163, 128
    %305 = vxpose.xlu0.b32.cont [9/16] %v168, 128
    %306 = vxpose.xlu0.b32.cont [10/16] %v173, 128
    %307 = vxpose.xlu0.b32.cont [11/16] %v178, 128
    %308 = vxpose.xlu0.b32.cont [12/16] %v183, 128
    %309 = vxpose.xlu0.b32.cont [13/16] %v188, 128
    %310 = vxpose.xlu0.b32.cont [14/16] %v193, 128
    %311 = vxpose.xlu0.b32.cont [15/16] %v198, 128
    %312 = vxpose.xlu0.b32.end [16/16] %v203, 128
    %v313 = vpop.trf.xlu0
    %v314 = vpop.trf.xlu0
    %v315 = vpop.trf.xlu0
    %v316 = vpop.trf.xlu0
    %v317 = vpop.trf.xlu0
    %v318 = vpop.trf.xlu0
    %v319 = vpop.trf.xlu0
    %v320 = vpop.trf.xlu0
    %v321 = vpop.trf.xlu0
    %v322 = vpop.trf.xlu0
    %v323 = vpop.trf.xlu0
    %v324 = vpop.trf.xlu0
    %v325 = vpop.trf.xlu0
    %v326 = vpop.trf.xlu0
    %v327 = vpop.trf.xlu0
    %v328 = vpop.trf.xlu0
    %329 = vmatprep.subr.mxu0 0.0
    %330 = vmatpush1.msra.mxu0 %v296
    %331 = vmatprep.subr.mxu0 0.0
    %332 = vmatpush1.msra.mxu0 %v295
    %333 = vmatprep.subr.mxu0 0.0
    %334 = vmatpush1.msra.mxu0 %v294
    %335 = vmatprep.subr.mxu0 0.0
    %336 = vmatpush1.msra.mxu0 %v293
    %337 = vmatprep.subr.mxu0 0.0
    %338 = vmatpush1.msra.mxu0 %v292
    %339 = vmatprep.subr.mxu0 0.0
    %340 = vmatpush1.msra.mxu0 %v291
    %341 = vmatprep.subr.mxu0 0.0
    %342 = vmatpush1.msra.mxu0 %v290
    %343 = vmatprep.subr.mxu0 0.0
    %344 = vmatpush1.msra.mxu0 %v289
    %345 = vmatprep.subr.mxu0 0.0
    %346 = vmatpush1.msra.mxu0 %v288
    %347 = vmatprep.subr.mxu0 0.0
    %348 = vmatpush1.msra.mxu0 %v287
    %349 = vmatprep.subr.mxu0 0.0
    %350 = vmatpush1.msra.mxu0 %v286
    %351 = vmatprep.subr.mxu0 0.0
    %352 = vmatpush1.msra.mxu0 %v285
    %353 = vmatprep.subr.mxu0 0.0
    %354 = vmatpush1.msra.mxu0 %v284
    %355 = vmatprep.subr.mxu0 0.0
    %356 = vmatpush1.msra.mxu0 %v283
    %357 = vmatprep.subr.mxu0 0.0
    %358 = vmatpush1.msra.mxu0 %v282
    %359 = vmatprep.subr.mxu0 0.0
    %360 = vmatpush1.msra.mxu0 %v281
    %361 = vmatprep.subr.mxu0 0.0
    %362 = vmatpush2.msra.mxu0 0.0
    %363 = vmatprep.subr.mxu0 0.0
    %364 = vmatpush2.msra.mxu0 0.0
    %365 = vmatprep.subr.mxu0 0.0
    %366 = vmatpush2.msra.mxu0 0.0
    %367 = vmatprep.subr.mxu0 0.0
    %368 = vmatpush2.msra.mxu0 0.0
    %369 = vmatprep.subr.mxu0 0.0
    %370 = vmatpush2.msra.mxu0 0.0
    %371 = vmatprep.subr.mxu0 0.0
    %372 = vmatpush2.msra.mxu0 0.0
    %373 = vmatprep.subr.mxu0 0.0
    %374 = vmatpush2.msra.mxu0 0.0
    %375 = vmatprep.subr.mxu0 0.0
    %376 = vmatpush2.msra.mxu0 0.0
    %377 = vmatprep.subr.mxu0 0.0
    %378 = vmatpush2.msra.mxu0 0.0
    %379 = vmatprep.subr.mxu0 0.0
    %380 = vmatpush2.msra.mxu0 0.0
    %381 = vmatprep.subr.mxu0 0.0
    %382 = vmatpush2.msra.mxu0 0.0
    %383 = vmatprep.subr.mxu0 0.0
    %384 = vmatpush2.msra.mxu0 0.0
    %385 = vmatprep.subr.mxu0 0.0
    %386 = vmatpush2.msra.mxu0 0.0
    %387 = vmatprep.subr.mxu0 0.0
    %388 = vmatpush2.msra.mxu0 0.0
    %389 = vmatprep.subr.mxu0 0.0
    %390 = vmatpush2.msra.mxu0 0.0
    %391 = vmatprep.subr.mxu0 0.0
    %392 = vmatpush2.msra.mxu0 0.0
    %393 = vmatprep.mubr.f32.mxu0 0.0
    %394 = vmatmul.mubr.f32.gmra.mxu0 %v313
    %v395 = vpop.f32.mrf.mxu0
    %v396 = vadd.f32 0.0, %v395
    %v397 = vpop.f32.mrf.mxu0
    %398 = vdwg.mxu0
    %v399 = vadd.f32 %v280, %v396
    %vm400 = vcmask 392192
    %401 = vst.msk [vmem:[#allocation3] sm:$0xff] %vm400, %v399
    // Predicated region
    $region22: #{tpu_custom_call.1} parent=1 // pred_check
      %p402 = pneg %p21
    $region23: #{tpu_custom_call.1} parent=1 // pred_check_branch
      %404 = sbr.rel (%p402) target = $region25
    $region24: #{tpu_custom_call.1} parent=1 // pred_region
      %v405 = vld [vmem:[#allocation2] sm:$0x1]
      %v406 = vsel %vm278, %v405, 0.0
      %407 = vadd.xlane.f32.xlu0 %v406
      %v408 = vpop.xlane.xlu0 %407
      %v409 = vmul.f32 %v408, 0.0078125
      %vm410 = vcmask 0
      %411 = vst.msk [vmem:[#allocation4] sm:$0x1] %vm410, %v409
      %v412 = vld [vmem:[#allocation3] sm:$0xff]
      %v414 = vrot.slane %v412, 1
      %415 = vrot.lane.b32.xlu0 %v414, 112
      %v416 = vpop.permute.xlu0 %415
      %v418 = vadd.f32 %v412, %v416
      %v419 = vrot.slane %v412, 2
      %420 = vrot.lane.b32.xlu0 %v419, 96
      %v421 = vpop.permute.xlu0 %420
      %v423 = vadd.f32 %v418, %v421
      %v424 = vmul.f32 %v423, 0.015625
      %vm425 = vcmask 122880
      %426 = vst.msk [vmem:[#allocation6] sm:$0x1] %vm425, %v424
    $region25: #{tpu_custom_call.1} parent=1 // pred_fallthru
      _
    // Predicated region
    $region26: #{tpu_custom_call.1} parent=1 // pred_check
      _
    $region27: #{tpu_custom_call.1} parent=1 // pred_check_branch
      %428 = sbr.rel (0) target = $region29
    $region28: #{tpu_custom_call.1} parent=1 // pred_region
      %s430 = ssub.s32 16, 16
      %431 = vsyncadd [#allocation5], %s430
      %s433 = sshll.u32 [#allocation4], 4
      %s434 = int_to_ptr.vmem [resolvable:$true] %s433
      %436 = dma.vmem_to_hbm [thread:$0]  %s434, 16, %s4, [#allocation5]
    $region29: #{tpu_custom_call.1} parent=1 // pred_fallthru
      _
    // Predicated region
    $region30: #{tpu_custom_call.1} parent=1 // pred_check
      _
    $region31: #{tpu_custom_call.1} parent=1 // pred_check_branch
      %438 = sbr.rel (0) target = $region33
    $region32: #{tpu_custom_call.1} parent=1 // pred_region
      %s440 = ssub.s32 16, 16
      %441 = vsyncadd [#allocation7], %s440
      %s443 = sshll.u32 [#allocation6], 4
      %s444 = int_to_ptr.vmem [resolvable:$true] %s443
      %446 = dma.vmem_to_hbm [thread:$0]  %s444, 16, %s5, [#allocation7]
    $region33: #{tpu_custom_call.1} parent=1 // pred_fallthru
      _
    // Predicated region
    $region34: #{tpu_custom_call.1} parent=1 // pred_check
      _
    $region35: #{tpu_custom_call.1} parent=1 // pred_check_branch
      %448 = sbr.rel (0) target = $region37
    $region36: #{tpu_custom_call.1} parent=1 // pred_region
      %449 = dma.done [#allocation5], 16
    $region37: #{tpu_custom_call.1} parent=1 // pred_fallthru
      _
    // Predicated region
    $region38: #{tpu_custom_call.1} parent=1 // pred_check
      _
    $region39: #{tpu_custom_call.1} parent=1 // pred_check_branch
      %451 = sbr.rel (0) target = $region41
    $region40: #{tpu_custom_call.1} parent=1 // pred_region
      %452 = dma.done [#allocation7], 16
    $region41: #{tpu_custom_call.1} parent=1 // pred_fallthru
      _
    %453 = vsyncpa [#allocation5], 1
    %454 = vsyncpa [#allocation7], 1

</llo_original>
